<compile_context>
chip_gen: v6e
topology: v6e:2x2x1
jax: 0.10.0
libtpu: 0.0.40
codegen_flags: <defaults>
</compile_context>

<pallas_src>
import functools
import math

import jax
import jax.numpy as jnp
import numpy as np
from jax import lax
from jax.experimental import pallas as pl
from jax.experimental.pallas import tpu as pltpu

LANE = 128


# ---------------------------------------------------------------------------
# Host-side glue (exact port of Mapper._calc_level_thresholds)
# ---------------------------------------------------------------------------
def calc_level_thresholds(strides, image_size):
    result = []
    last_size = image_size
    for i in range(len(strides) - 1, -1, -1):
        s = strides[i]
        pixel_size = float(s) / image_size
        th_max = math.ceil(last_size / s)
        if th_max % 2:
            th_max += 1
        th_min = th_max // 2
        last_size = th_min * s
        if i == 0:
            th_min = 1
        result.append((th_min * pixel_size, th_max * pixel_size))
    return tuple(result[::-1])


# ---------------------------------------------------------------------------
# Kernel: one grid step = (one batch sample, one 8x128 pixel tile of the
# fused all-level slab).  Boxes/labels are SMEM scalars; mx/my/th planes are
# a small VMEM input tiled alongside the output.
# ---------------------------------------------------------------------------
def _mapper_kernel(boxes_ref, labels_ref, grid_ref, out_ref, *,
                   num_classes, num_boxes):
    C = num_classes
    bi = pl.program_id(0)
    bbase = bi * num_boxes * 4
    lbase = bi * num_boxes

    mx = grid_ref[0]      # normalized cell-center x   (TILE_ROWS, LANE)
    my = grid_ref[1]      # normalized cell-center y
    th_lo = grid_ref[2]   # per-pixel level threshold lo (padding: never pred)
    th_hi = grid_ref[3]   # per-pixel level threshold hi
    shape = mx.shape

    zeros = jnp.zeros(shape, jnp.float32)
    init = (zeros, zeros, zeros, zeros,                 # winner box x0,y0,x1,y1
            jnp.full(shape, -1.0, jnp.float32),         # winner label (-1 = none)
            jnp.ones(shape, jnp.float32))               # background channel value

    def body(k, state):
        x0w, y0w, x1w, y1w, labw, bg = state
        x0 = boxes_ref[bbase + 4 * k + 0]
        y0 = boxes_ref[bbase + 4 * k + 1]
        x1 = boxes_ref[bbase + 4 * k + 2]
        y1 = boxes_ref[bbase + 4 * k + 3]
        lab = labels_ref[lbase + k]

        l = mx - x0
        t = my - y0
        r = x1 - mx
        b = y1 - my
        mn = jnp.minimum(jnp.minimum(l, t), jnp.minimum(r, b))
        mv = jnp.maximum(jnp.maximum(l, t), jnp.maximum(r, b))
        fg = mn >= 0.0                                   # _filter_background
        pred = fg & (mv > th_lo) & (mv <= th_hi)         # _mask

        # Track only the winning (last-pred in descending-area order) box.
        x0w = jnp.where(pred, x0, x0w)
        y0w = jnp.where(pred, y0, y0w)
        x1w = jnp.where(pred, x1, x1w)
        y1w = jnp.where(pred, y1, y1w)
        labw = jnp.where(pred, lab.astype(jnp.float32), labw)
        # Exact cls[0] recurrence: pred -> (label==0); elif fg -> 0; else keep.
        is_bg = (lab == 0).astype(jnp.float32)
        bg = jnp.where(pred, is_bg, jnp.where(fg, 0.0, bg))
        return (x0w, y0w, x1w, y1w, labw, bg)

    unroll = num_boxes if num_boxes <= 16 else 8
    x0w, y0w, x1w, y1w, labw, bg = lax.fori_loop(
        0, num_boxes, body, init, unroll=unroll)

    # Materialize reg / centerness / class maps once from the winner box.
    win = labw >= 0.0
    l = mx - x0w
    t = my - y0w
    r = x1w - mx
    b = y1w - my
    out_ref[0, 0] = jnp.where(win, l, 0.0)
    out_ref[0, 1] = jnp.where(win, t, 0.0)
    out_ref[0, 2] = jnp.where(win, r, 0.0)
    out_ref[0, 3] = jnp.where(win, b, 0.0)
    num = jnp.minimum(l, r) * jnp.minimum(t, b)
    den = jnp.maximum(l, r) * jnp.maximum(t, b)
    ctr = jnp.sqrt(num) * lax.rsqrt(den)                 # EUP sqrt + rsqrt
    out_ref[0, 4] = jnp.where(win, ctr, 0.0)

    labw_i = labw.astype(jnp.int32)
    cls_iota = lax.broadcasted_iota(jnp.int32, (C,) + shape, 0)
    onehot = (cls_iota == labw_i[None]) & win[None]
    out_ref[0, pl.ds(5, C)] = onehot.astype(jnp.float32)
    out_ref[0, 5] = bg                                   # overwrite class 0 (bg)


# ---------------------------------------------------------------------------
# Wrapper: single fused pallas_call; per-level NCHW slicing done in XLA.
# ---------------------------------------------------------------------------
def make_mapper(strides, image_size, num_classes, batch, num_boxes,
                tile_rows=8):
    thresholds = calc_level_thresholds(strides, image_size)
    ctot = 5 + num_classes

    level_hw = [(image_size // s, image_size // s) for s in strides]
    total_px = sum(h * w for h, w in level_hw)

    rows = -(-total_px // LANE)                       # ceil div to lanes
    rows = -(-rows // tile_rows) * tile_rows          # pad to tile_rows
    n_pix = rows * LANE
    n_tiles = rows // tile_rows

    # Fused per-pixel maps: mx, my, th_lo, th_hi.  Padding pixels are set so
    # fg/pred are always false (mx=my=-1, th_hi=-1) -> discarded anyway.
    mx = np.full(n_pix, -1.0, np.float32)
    my = np.full(n_pix, -1.0, np.float32)
    tl = np.full(n_pix, 2.0, np.float32)
    th = np.full(n_pix, -1.0, np.float32)
    off = 0
    for li, s in enumerate(strides):
        H, W = level_hw[li]
        ps = float(s) / image_size
        idx = np.arange(H * W, dtype=np.float32)
        # TODO(synk): LevelMapOperations._create_level_reg_maps is not provided;
        # assume grid maps hold normalized cell-center coords (i+0.5)*stride/image_size.
        mx[off:off + H * W] = ((idx % W) + 0.5) * ps
        my[off:off + H * W] = (np.floor(idx / W) + 0.5) * ps
        tl[off:off + H * W] = thresholds[li][0]
        th[off:off + H * W] = thresholds[li][1]
        off += H * W
    grid_maps = jnp.asarray(
        np.stack([mx, my, tl, th]).reshape(4, rows, LANE), dtype=jnp.float32)

    kernel = functools.partial(_mapper_kernel, num_classes=num_classes,
                               num_boxes=num_boxes)

    out_block = ctot * tile_rows * LANE * 4
    grid_block = 4 * tile_rows * LANE * 4
    vmem_limit = int(min(max(2 * (out_block + grid_block) + (4 << 20),
                             32 << 20), 64 << 20))

    fn = pl.pallas_call(
        kernel,
        out_shape=jax.ShapeDtypeStruct((batch, ctot, rows, LANE), jnp.float32),
        grid=(batch, n_tiles),
        in_specs=[
            pl.BlockSpec(memory_space=pltpu.MemorySpace.SMEM),   # boxes, flat 1-D
            pl.BlockSpec(memory_space=pltpu.MemorySpace.SMEM),   # labels, flat 1-D
            pl.BlockSpec((4, tile_rows, LANE), lambda b, t: (0, t, 0)),
        ],
        out_specs=pl.BlockSpec((1, ctot, tile_rows, LANE),
                               lambda b, t: (b, 0, t, 0)),
        compiler_params=pltpu.CompilerParams(
            dimension_semantics=("parallel", "parallel"),
            vmem_limit_bytes=vmem_limit),
    )

    def forward(boxes, labels):
        # boxes: (B, N, 4) normalized xyxy in [0, 1]; labels: (B, N) int.
        # Sort by descending area (smaller boxes override larger), mirroring
        # sorted(..., key=area, reverse=True).
        area = (boxes[..., 2] - boxes[..., 0]) * (boxes[..., 3] - boxes[..., 1])
        order = jnp.argsort(-area, axis=-1)
        boxes_sorted = jnp.take_along_axis(boxes, order[..., None], axis=1)
        labels_sorted = jnp.take_along_axis(labels, order, axis=1)
        boxes_flat = boxes_sorted.reshape(-1).astype(jnp.float32)
        labels_flat = labels_sorted.reshape(-1).astype(jnp.int32)
        # TODO(synk): PyTorch mutates cached self._empty_maps in place
        # (_clear_box_background aliasing); implemented functionally here.
        fused = fn(boxes_flat, labels_flat, grid_maps)
        flat = fused.reshape(boxes.shape[0], ctot, rows * LANE)
        outs = []
        p = 0
        for (H, W) in level_hw:
            outs.append(flat[:, :, p:p + H * W].reshape(boxes.shape[0], ctot, H, W))
            p += H * W
        return outs

    return forward, thresholds


# ---------------------------------------------------------------------------
# Pure-numpy reference (same semantics) for validation.
# ---------------------------------------------------------------------------
def mapper_reference(boxes, labels, strides, image_size, num_classes, thresholds):
    B, N, _ = boxes.shape
    C = num_classes
    outs = []
    for li, s in enumerate(strides):
        H = W = image_size // s
        ps = float(s) / image_size
        mx = np.broadcast_to((np.arange(W, dtype=np.float32) + 0.5)[None, :] * ps, (H, W))
        my = np.broadcast_to((np.arange(H, dtype=np.float32) + 0.5)[:, None] * ps, (H, W))
        th_lo, th_hi = thresholds[li]
        level_out = np.zeros((B, 5 + C, H, W), np.float32)
        for bi in range(B):
            reg = np.zeros((4, H, W), np.float32)
            ctr = np.zeros((H, W), np.float32)
            cls = np.zeros((C, H, W), np.float32)
            cls[0] = 1.0
            area = (boxes[bi, :, 2] - boxes[bi, :, 0]) * (boxes[bi, :, 3] - boxes[bi, :, 1])
            order = np.argsort(-area, kind="stable")
            for k in order:
                x0, y0, x1, y1 = boxes[bi, k]
                lab = int(labels[bi, k])
                l, t, r, b = mx - x0, my - y0, x1 - mx, y1 - my
                mn = np.minimum(np.minimum(l, t), np.minimum(r, b))
                mv = np.maximum(np.maximum(l, t), np.maximum(r, b))
                fg = mn >= 0
                pred = fg & (mv > th_lo) & (mv <= th_hi)
                with np.errstate(invalid="ignore", divide="ignore"):
                    ctr_slab = np.sqrt((np.minimum(l, r) / np.maximum(l, r)) *
                                       (np.minimum(t, b) / np.maximum(t, b)))
                cls[0] = np.where(fg, 0.0, cls[0])
                for c in range(C):
                    cls[c] = np.where(pred, 1.0 if c == lab else 0.0, cls[c])
                for i, slab in enumerate((l, t, r, b)):
                    reg[i] = np.where(pred, slab, reg[i])
                ctr = np.where(pred, ctr_slab, ctr)
            level_out[bi, 0:4] = reg
            level_out[bi, 4] = ctr
            level_out[bi, 5:] = cls
        outs.append(level_out)
    return outs


if __name__ == "__main__":
    strides = (8, 16, 32)
    image_size = 64
    num_classes = 4
    batch = 2
    num_boxes = 3

    key = jax.random.PRNGKey(0)
    kb, kl = jax.random.split(key)
    pts = jax.random.uniform(kb, (batch, num_boxes, 2, 2), dtype=jnp.float32,
                             minval=0.05, maxval=0.95)
    lo = jnp.min(pts, axis=2)
    hi = jnp.max(pts, axis=2)
    boxes = jnp.concatenate([lo, hi], axis=-1)                  # (B, N, 4) normalized xyxy
    labels = jax.random.randint(kl, (batch, num_boxes), 1, num_classes)

    forward, thresholds = make_mapper(strides, image_size, num_classes, batch, num_boxes)
    outs = forward(boxes, labels)
    outs = [jax.block_until_ready(o) for o in outs]

    refs = mapper_reference(np.asarray(boxes), np.asarray(labels), strides,
                            image_size, num_classes, thresholds)
    for o, r in zip(outs, refs):
        np.testing.assert_allclose(np.asarray(o), r, rtol=1e-4, atol=1e-5)

    print("KERNEL_OK")
</pallas_src>

<mosaic_0001>
module attributes {stable_mosaic.version = 11 : i64} {
  func.func @_mapper_kernel(%arg0: i32, %arg1: i32, %arg2: memref<24xf32, #tpu.memory_space<smem>>, %arg3: memref<6xi32, #tpu.memory_space<smem>>, %arg4: memref<4x8x128xf32, #tpu.memory_space<vmem>>, %arg5: memref<1x9x8x128xf32, #tpu.memory_space<vmem>>) attributes {dimension_semantics = [#tpu.dimension_semantics<parallel>, #tpu.dimension_semantics<parallel>], iteration_bounds = array<i64: 2, 1>, scalar_prefetch = 0 : i64, scratch_operands = 0 : i64, tpu.core_type = #tpu.core_type<tc>, window_params = [{transform_indices = @transform_0, window_bounds = array<i64: 24>}, {transform_indices = @transform_1, window_bounds = array<i64: 6>}, {transform_indices = @transform_2, window_bounds = array<i64: 4, 8, 128>}, {transform_indices = @transform_3, window_bounds = array<i64: 1, 9, 8, 128>}]} {
    %c3_i32 = arith.constant 3 : i32
    %0 = arith.muli %arg0, %c3_i32 : i32
    %c4_i32 = arith.constant 4 : i32
    %1 = arith.muli %0, %c4_i32 : i32
    %c3_i32_0 = arith.constant 3 : i32
    %2 = arith.muli %arg0, %c3_i32_0 : i32
    %c0 = arith.constant 0 : index
    %c0_1 = arith.constant 0 : index
    %c0_2 = arith.constant 0 : index
    %3 = vector.load %arg4[%c0, %c0_1, %c0_2] : memref<4x8x128xf32, #tpu.memory_space<vmem>>, vector<1x8x128xf32>
    %4 = vector.shape_cast %3 : vector<1x8x128xf32> to vector<8x128xf32>
    %c1 = arith.constant 1 : index
    %c0_3 = arith.constant 0 : index
    %c0_4 = arith.constant 0 : index
    %5 = vector.load %arg4[%c1, %c0_3, %c0_4] : memref<4x8x128xf32, #tpu.memory_space<vmem>>, vector<1x8x128xf32>
    %6 = vector.shape_cast %5 : vector<1x8x128xf32> to vector<8x128xf32>
    %c2 = arith.constant 2 : index
    %c0_5 = arith.constant 0 : index
    %c0_6 = arith.constant 0 : index
    %7 = vector.load %arg4[%c2, %c0_5, %c0_6] : memref<4x8x128xf32, #tpu.memory_space<vmem>>, vector<1x8x128xf32>
    %8 = vector.shape_cast %7 : vector<1x8x128xf32> to vector<8x128xf32>
    %c3 = arith.constant 3 : index
    %c0_7 = arith.constant 0 : index
    %c0_8 = arith.constant 0 : index
    %9 = vector.load %arg4[%c3, %c0_7, %c0_8] : memref<4x8x128xf32, #tpu.memory_space<vmem>>, vector<1x8x128xf32>
    %10 = vector.shape_cast %9 : vector<1x8x128xf32> to vector<8x128xf32>
    %cst = arith.constant 0.000000e+00 : f32
    %11 = vector.broadcast %cst : f32 to vector<8x128xf32>
    %cst_9 = arith.constant -1.000000e+00 : f32
    %12 = vector.broadcast %cst_9 : f32 to vector<8x128xf32>
    %cst_10 = arith.constant 1.000000e+00 : f32
    %13 = vector.broadcast %cst_10 : f32 to vector<8x128xf32>
    %c0_i32 = arith.constant 0 : i32
    %c4_i32_11 = arith.constant 4 : i32
    %14 = arith.muli %c4_i32_11, %c0_i32 : i32
    %15 = arith.addi %1, %14 : i32
    %c0_i32_12 = arith.constant 0 : i32
    %16 = arith.addi %15, %c0_i32_12 : i32
    %17 = arith.index_cast %16 : i32 to index
    %18 = memref.load %arg2[%17] : memref<24xf32, #tpu.memory_space<smem>>
    %c4_i32_13 = arith.constant 4 : i32
    %19 = arith.muli %c4_i32_13, %c0_i32 : i32
    %20 = arith.addi %1, %19 : i32
    %c1_i32 = arith.constant 1 : i32
    %21 = arith.addi %20, %c1_i32 : i32
    %22 = arith.index_cast %21 : i32 to index
    %23 = memref.load %arg2[%22] : memref<24xf32, #tpu.memory_space<smem>>
    %c4_i32_14 = arith.constant 4 : i32
    %24 = arith.muli %c4_i32_14, %c0_i32 : i32
    %25 = arith.addi %1, %24 : i32
    %c2_i32 = arith.constant 2 : i32
    %26 = arith.addi %25, %c2_i32 : i32
    %27 = arith.index_cast %26 : i32 to index
    %28 = memref.load %arg2[%27] : memref<24xf32, #tpu.memory_space<smem>>
    %c4_i32_15 = arith.constant 4 : i32
    %29 = arith.muli %c4_i32_15, %c0_i32 : i32
    %30 = arith.addi %1, %29 : i32
    %c3_i32_16 = arith.constant 3 : i32
    %31 = arith.addi %30, %c3_i32_16 : i32
    %32 = arith.index_cast %31 : i32 to index
    %33 = memref.load %arg2[%32] : memref<24xf32, #tpu.memory_space<smem>>
    %34 = arith.addi %2, %c0_i32 : i32
    %35 = arith.index_cast %34 : i32 to index
    %36 = memref.load %arg3[%35] : memref<6xi32, #tpu.memory_space<smem>>
    %37 = vector.broadcast %18 : f32 to vector<8x128xf32>
    %38 = arith.subf %4, %37 : vector<8x128xf32>
    %39 = vector.broadcast %23 : f32 to vector<8x128xf32>
    %40 = arith.subf %6, %39 : vector<8x128xf32>
    %41 = vector.broadcast %28 : f32 to vector<8x128xf32>
    %42 = arith.subf %41, %4 : vector<8x128xf32>
    %43 = vector.broadcast %33 : f32 to vector<8x128xf32>
    %44 = arith.subf %43, %6 : vector<8x128xf32>
    %45 = arith.minimumf %38, %40 : vector<8x128xf32>
    %46 = arith.minimumf %42, %44 : vector<8x128xf32>
    %47 = arith.minimumf %45, %46 : vector<8x128xf32>
    %48 = arith.maximumf %38, %40 : vector<8x128xf32>
    %49 = arith.maximumf %42, %44 : vector<8x128xf32>
    %50 = arith.maximumf %48, %49 : vector<8x128xf32>
    %cst_17 = arith.constant 0.000000e+00 : f32
    %51 = vector.broadcast %cst_17 : f32 to vector<8x128xf32>
    %52 = arith.cmpf oge, %47, %51 : vector<8x128xf32>
    %53 = arith.cmpf ogt, %50, %8 : vector<8x128xf32>
    %54 = arith.andi %52, %53 : vector<8x128xi1>
    %55 = arith.cmpf ole, %50, %10 : vector<8x128xf32>
    %56 = arith.andi %54, %55 : vector<8x128xi1>
    %57 = vector.broadcast %18 : f32 to vector<8x128xf32>
    %58 = arith.select %56, %57, %11 : vector<8x128xi1>, vector<8x128xf32>
    %59 = vector.broadcast %23 : f32 to vector<8x128xf32>
    %60 = arith.select %56, %59, %11 : vector<8x128xi1>, vector<8x128xf32>
    %61 = vector.broadcast %28 : f32 to vector<8x128xf32>
    %62 = arith.select %56, %61, %11 : vector<8x128xi1>, vector<8x128xf32>
    %63 = vector.broadcast %33 : f32 to vector<8x128xf32>
    %64 = arith.select %56, %63, %11 : vector<8x128xi1>, vector<8x128xf32>
    %65 = arith.sitofp %36 : i32 to f32
    %66 = vector.broadcast %65 : f32 to vector<8x128xf32>
    %67 = arith.select %56, %66, %12 : vector<8x128xi1>, vector<8x128xf32>
    %c0_i32_18 = arith.constant 0 : i32
    %68 = arith.cmpi eq, %36, %c0_i32_18 : i32
    %69 = arith.extui %68 : i1 to i32
    %70 = arith.sitofp %69 : i32 to f32
    %cst_19 = arith.constant 0.000000e+00 : f32
    %71 = vector.broadcast %cst_19 : f32 to vector<8x128xf32>
    %72 = arith.select %52, %71, %13 : vector<8x128xi1>, vector<8x128xf32>
    %73 = vector.broadcast %70 : f32 to vector<8x128xf32>
    %74 = arith.select %56, %73, %72 : vector<8x128xi1>, vector<8x128xf32>
    %c1_i32_20 = arith.constant 1 : i32
    %c4_i32_21 = arith.constant 4 : i32
    %75 = arith.muli %c4_i32_21, %c1_i32_20 : i32
    %76 = arith.addi %1, %75 : i32
    %c0_i32_22 = arith.constant 0 : i32
    %77 = arith.addi %76, %c0_i32_22 : i32
    %78 = arith.index_cast %77 : i32 to index
    %79 = memref.load %arg2[%78] : memref<24xf32, #tpu.memory_space<smem>>
    %c4_i32_23 = arith.constant 4 : i32
    %80 = arith.muli %c4_i32_23, %c1_i32_20 : i32
    %81 = arith.addi %1, %80 : i32
    %c1_i32_24 = arith.constant 1 : i32
    %82 = arith.addi %81, %c1_i32_24 : i32
    %83 = arith.index_cast %82 : i32 to index
    %84 = memref.load %arg2[%83] : memref<24xf32, #tpu.memory_space<smem>>
    %c4_i32_25 = arith.constant 4 : i32
    %85 = arith.muli %c4_i32_25, %c1_i32_20 : i32
    %86 = arith.addi %1, %85 : i32
    %c2_i32_26 = arith.constant 2 : i32
    %87 = arith.addi %86, %c2_i32_26 : i32
    %88 = arith.index_cast %87 : i32 to index
    %89 = memref.load %arg2[%88] : memref<24xf32, #tpu.memory_space<smem>>
    %c4_i32_27 = arith.constant 4 : i32
    %90 = arith.muli %c4_i32_27, %c1_i32_20 : i32
    %91 = arith.addi %1, %90 : i32
    %c3_i32_28 = arith.constant 3 : i32
    %92 = arith.addi %91, %c3_i32_28 : i32
    %93 = arith.index_cast %92 : i32 to index
    %94 = memref.load %arg2[%93] : memref<24xf32, #tpu.memory_space<smem>>
    %95 = arith.addi %2, %c1_i32_20 : i32
    %96 = arith.index_cast %95 : i32 to index
    %97 = memref.load %arg3[%96] : memref<6xi32, #tpu.memory_space<smem>>
    %98 = vector.broadcast %79 : f32 to vector<8x128xf32>
    %99 = arith.subf %4, %98 : vector<8x128xf32>
    %100 = vector.broadcast %84 : f32 to vector<8x128xf32>
    %101 = arith.subf %6, %100 : vector<8x128xf32>
    %102 = vector.broadcast %89 : f32 to vector<8x128xf32>
    %103 = arith.subf %102, %4 : vector<8x128xf32>
    %104 = vector.broadcast %94 : f32 to vector<8x128xf32>
    %105 = arith.subf %104, %6 : vector<8x128xf32>
    %106 = arith.minimumf %99, %101 : vector<8x128xf32>
    %107 = arith.minimumf %103, %105 : vector<8x128xf32>
    %108 = arith.minimumf %106, %107 : vector<8x128xf32>
    %109 = arith.maximumf %99, %101 : vector<8x128xf32>
    %110 = arith.maximumf %103, %105 : vector<8x128xf32>
    %111 = arith.maximumf %109, %110 : vector<8x128xf32>
    %cst_29 = arith.constant 0.000000e+00 : f32
    %112 = vector.broadcast %cst_29 : f32 to vector<8x128xf32>
    %113 = arith.cmpf oge, %108, %112 : vector<8x128xf32>
    %114 = arith.cmpf ogt, %111, %8 : vector<8x128xf32>
    %115 = arith.andi %113, %114 : vector<8x128xi1>
    %116 = arith.cmpf ole, %111, %10 : vector<8x128xf32>
    %117 = arith.andi %115, %116 : vector<8x128xi1>
    %118 = vector.broadcast %79 : f32 to vector<8x128xf32>
    %119 = arith.select %117, %118, %58 : vector<8x128xi1>, vector<8x128xf32>
    %120 = vector.broadcast %84 : f32 to vector<8x128xf32>
    %121 = arith.select %117, %120, %60 : vector<8x128xi1>, vector<8x128xf32>
    %122 = vector.broadcast %89 : f32 to vector<8x128xf32>
    %123 = arith.select %117, %122, %62 : vector<8x128xi1>, vector<8x128xf32>
    %124 = vector.broadcast %94 : f32 to vector<8x128xf32>
    %125 = arith.select %117, %124, %64 : vector<8x128xi1>, vector<8x128xf32>
    %126 = arith.sitofp %97 : i32 to f32
    %127 = vector.broadcast %126 : f32 to vector<8x128xf32>
    %128 = arith.select %117, %127, %67 : vector<8x128xi1>, vector<8x128xf32>
    %c0_i32_30 = arith.constant 0 : i32
    %129 = arith.cmpi eq, %97, %c0_i32_30 : i32
    %130 = arith.extui %129 : i1 to i32
    %131 = arith.sitofp %130 : i32 to f32
    %cst_31 = arith.constant 0.000000e+00 : f32
    %132 = vector.broadcast %cst_31 : f32 to vector<8x128xf32>
    %133 = arith.select %113, %132, %74 : vector<8x128xi1>, vector<8x128xf32>
    %134 = vector.broadcast %131 : f32 to vector<8x128xf32>
    %135 = arith.select %117, %134, %133 : vector<8x128xi1>, vector<8x128xf32>
    %c2_i32_32 = arith.constant 2 : i32
    %c4_i32_33 = arith.constant 4 : i32
    %136 = arith.muli %c4_i32_33, %c2_i32_32 : i32
    %137 = arith.addi %1, %136 : i32
    %c0_i32_34 = arith.constant 0 : i32
    %138 = arith.addi %137, %c0_i32_34 : i32
    %139 = arith.index_cast %138 : i32 to index
    %140 = memref.load %arg2[%139] : memref<24xf32, #tpu.memory_space<smem>>
    %c4_i32_35 = arith.constant 4 : i32
    %141 = arith.muli %c4_i32_35, %c2_i32_32 : i32
    %142 = arith.addi %1, %141 : i32
    %c1_i32_36 = arith.constant 1 : i32
    %143 = arith.addi %142, %c1_i32_36 : i32
    %144 = arith.index_cast %143 : i32 to index
    %145 = memref.load %arg2[%144] : memref<24xf32, #tpu.memory_space<smem>>
    %c4_i32_37 = arith.constant 4 : i32
    %146 = arith.muli %c4_i32_37, %c2_i32_32 : i32
    %147 = arith.addi %1, %146 : i32
    %c2_i32_38 = arith.constant 2 : i32
    %148 = arith.addi %147, %c2_i32_38 : i32
    %149 = arith.index_cast %148 : i32 to index
    %150 = memref.load %arg2[%149] : memref<24xf32, #tpu.memory_space<smem>>
    %c4_i32_39 = arith.constant 4 : i32
    %151 = arith.muli %c4_i32_39, %c2_i32_32 : i32
    %152 = arith.addi %1, %151 : i32
    %c3_i32_40 = arith.constant 3 : i32
    %153 = arith.addi %152, %c3_i32_40 : i32
    %154 = arith.index_cast %153 : i32 to index
    %155 = memref.load %arg2[%154] : memref<24xf32, #tpu.memory_space<smem>>
    %156 = arith.addi %2, %c2_i32_32 : i32
    %157 = arith.index_cast %156 : i32 to index
    %158 = memref.load %arg3[%157] : memref<6xi32, #tpu.memory_space<smem>>
    %159 = vector.broadcast %140 : f32 to vector<8x128xf32>
    %160 = arith.subf %4, %159 : vector<8x128xf32>
    %161 = vector.broadcast %145 : f32 to vector<8x128xf32>
    %162 = arith.subf %6, %161 : vector<8x128xf32>
    %163 = vector.broadcast %150 : f32 to vector<8x128xf32>
    %164 = arith.subf %163, %4 : vector<8x128xf32>
    %165 = vector.broadcast %155 : f32 to vector<8x128xf32>
    %166 = arith.subf %165, %6 : vector<8x128xf32>
    %167 = arith.minimumf %160, %162 : vector<8x128xf32>
    %168 = arith.minimumf %164, %166 : vector<8x128xf32>
    %169 = arith.minimumf %167, %168 : vector<8x128xf32>
    %170 = arith.maximumf %160, %162 : vector<8x128xf32>
    %171 = arith.maximumf %164, %166 : vector<8x128xf32>
    %172 = arith.maximumf %170, %171 : vector<8x128xf32>
    %cst_41 = arith.constant 0.000000e+00 : f32
    %173 = vector.broadcast %cst_41 : f32 to vector<8x128xf32>
    %174 = arith.cmpf oge, %169, %173 : vector<8x128xf32>
    %175 = arith.cmpf ogt, %172, %8 : vector<8x128xf32>
    %176 = arith.andi %174, %175 : vector<8x128xi1>
    %177 = arith.cmpf ole, %172, %10 : vector<8x128xf32>
    %178 = arith.andi %176, %177 : vector<8x128xi1>
    %179 = vector.broadcast %140 : f32 to vector<8x128xf32>
    %180 = arith.select %178, %179, %119 : vector<8x128xi1>, vector<8x128xf32>
    %181 = vector.broadcast %145 : f32 to vector<8x128xf32>
    %182 = arith.select %178, %181, %121 : vector<8x128xi1>, vector<8x128xf32>
    %183 = vector.broadcast %150 : f32 to vector<8x128xf32>
    %184 = arith.select %178, %183, %123 : vector<8x128xi1>, vector<8x128xf32>
    %185 = vector.broadcast %155 : f32 to vector<8x128xf32>
    %186 = arith.select %178, %185, %125 : vector<8x128xi1>, vector<8x128xf32>
    %187 = arith.sitofp %158 : i32 to f32
    %188 = vector.broadcast %187 : f32 to vector<8x128xf32>
    %189 = arith.select %178, %188, %128 : vector<8x128xi1>, vector<8x128xf32>
    %c0_i32_42 = arith.constant 0 : i32
    %190 = arith.cmpi eq, %158, %c0_i32_42 : i32
    %191 = arith.extui %190 : i1 to i32
    %192 = arith.sitofp %191 : i32 to f32
    %cst_43 = arith.constant 0.000000e+00 : f32
    %193 = vector.broadcast %cst_43 : f32 to vector<8x128xf32>
    %194 = arith.select %174, %193, %135 : vector<8x128xi1>, vector<8x128xf32>
    %195 = vector.broadcast %192 : f32 to vector<8x128xf32>
    %196 = arith.select %178, %195, %194 : vector<8x128xi1>, vector<8x128xf32>
    %c3_i32_44 = arith.constant 3 : i32
    %cst_45 = arith.constant 0.000000e+00 : f32
    %197 = vector.broadcast %cst_45 : f32 to vector<8x128xf32>
    %198 = arith.cmpf oge, %189, %197 : vector<8x128xf32>
    %199 = arith.subf %4, %180 : vector<8x128xf32>
    %200 = arith.subf %6, %182 : vector<8x128xf32>
    %201 = arith.subf %184, %4 : vector<8x128xf32>
    %202 = arith.subf %186, %6 : vector<8x128xf32>
    %cst_46 = arith.constant 0.000000e+00 : f32
    %203 = vector.broadcast %cst_46 : f32 to vector<8x128xf32>
    %204 = arith.select %198, %199, %203 : vector<8x128xi1>, vector<8x128xf32>
    %c0_47 = arith.constant 0 : index
    %c0_48 = arith.constant 0 : index
    %c0_49 = arith.constant 0 : index
    %c0_50 = arith.constant 0 : index
    %205 = vector.load %arg5[%c0_47, %c0_48, %c0_49, %c0_50] : memref<1x9x8x128xf32, #tpu.memory_space<vmem>>, vector<1x1x8x128xf32>
    %206 = vector.shape_cast %205 : vector<1x1x8x128xf32> to vector<8x128xf32>
    %207 = vector.shape_cast %204 : vector<8x128xf32> to vector<1x1x8x128xf32>
    tpu.vector_store %arg5[%c0_47, %c0_48, %c0_49, %c0_50], %207 {strides = array<i32>} : memref<1x9x8x128xf32, #tpu.memory_space<vmem>>, vector<1x1x8x128xf32>,
    %cst_51 = arith.constant 0.000000e+00 : f32
    %208 = vector.broadcast %cst_51 : f32 to vector<8x128xf32>
    %209 = arith.select %198, %200, %208 : vector<8x128xi1>, vector<8x128xf32>
    %c0_52 = arith.constant 0 : index
    %c1_53 = arith.constant 1 : index
    %c0_54 = arith.constant 0 : index
    %c0_55 = arith.constant 0 : index
    %210 = vector.load %arg5[%c0_52, %c1_53, %c0_54, %c0_55] : memref<1x9x8x128xf32, #tpu.memory_space<vmem>>, vector<1x1x8x128xf32>
    %211 = vector.shape_cast %210 : vector<1x1x8x128xf32> to vector<8x128xf32>
    %212 = vector.shape_cast %209 : vector<8x128xf32> to vector<1x1x8x128xf32>
    tpu.vector_store %arg5[%c0_52, %c1_53, %c0_54, %c0_55], %212 {strides = array<i32>} : memref<1x9x8x128xf32, #tpu.memory_space<vmem>>, vector<1x1x8x128xf32>,
    %cst_56 = arith.constant 0.000000e+00 : f32
    %213 = vector.broadcast %cst_56 : f32 to vector<8x128xf32>
    %214 = arith.select %198, %201, %213 : vector<8x128xi1>, vector<8x128xf32>
    %c0_57 = arith.constant 0 : index
    %c2_58 = arith.constant 2 : index
    %c0_59 = arith.constant 0 : index
    %c0_60 = arith.constant 0 : index
    %215 = vector.load %arg5[%c0_57, %c2_58, %c0_59, %c0_60] : memref<1x9x8x128xf32, #tpu.memory_space<vmem>>, vector<1x1x8x128xf32>
    %216 = vector.shape_cast %215 : vector<1x1x8x128xf32> to vector<8x128xf32>
    %217 = vector.shape_cast %214 : vector<8x128xf32> to vector<1x1x8x128xf32>
    tpu.vector_store %arg5[%c0_57, %c2_58, %c0_59, %c0_60], %217 {strides = array<i32>} : memref<1x9x8x128xf32, #tpu.memory_space<vmem>>, vector<1x1x8x128xf32>,
    %cst_61 = arith.constant 0.000000e+00 : f32
    %218 = vector.broadcast %cst_61 : f32 to vector<8x128xf32>
    %219 = arith.select %198, %202, %218 : vector<8x128xi1>, vector<8x128xf32>
    %c0_62 = arith.constant 0 : index
    %c3_63 = arith.constant 3 : index
    %c0_64 = arith.constant 0 : index
    %c0_65 = arith.constant 0 : index
    %220 = vector.load %arg5[%c0_62, %c3_63, %c0_64, %c0_65] : memref<1x9x8x128xf32, #tpu.memory_space<vmem>>, vector<1x1x8x128xf32>
    %221 = vector.shape_cast %220 : vector<1x1x8x128xf32> to vector<8x128xf32>
    %222 = vector.shape_cast %219 : vector<8x128xf32> to vector<1x1x8x128xf32>
    tpu.vector_store %arg5[%c0_62, %c3_63, %c0_64, %c0_65], %222 {strides = array<i32>} : memref<1x9x8x128xf32, #tpu.memory_space<vmem>>, vector<1x1x8x128xf32>,
    %223 = arith.minimumf %199, %201 : vector<8x128xf32>
    %224 = arith.minimumf %200, %202 : vector<8x128xf32>
    %225 = arith.mulf %223, %224 : vector<8x128xf32>
    %226 = arith.maximumf %199, %201 : vector<8x128xf32>
    %227 = arith.maximumf %200, %202 : vector<8x128xf32>
    %228 = arith.mulf %226, %227 : vector<8x128xf32>
    %229 = math.sqrt %225 : vector<8x128xf32>
    %230 = math.rsqrt %228 : vector<8x128xf32>
    %231 = arith.mulf %229, %230 : vector<8x128xf32>
    %cst_66 = arith.constant 0.000000e+00 : f32
    %232 = vector.broadcast %cst_66 : f32 to vector<8x128xf32>
    %233 = arith.select %198, %231, %232 : vector<8x128xi1>, vector<8x128xf32>
    %c0_67 = arith.constant 0 : index
    %c4 = arith.constant 4 : index
    %c0_68 = arith.constant 0 : index
    %c0_69 = arith.constant 0 : index
    %234 = vector.load %arg5[%c0_67, %c4, %c0_68, %c0_69] : memref<1x9x8x128xf32, #tpu.memory_space<vmem>>, vector<1x1x8x128xf32>
    %235 = vector.shape_cast %234 : vector<1x1x8x128xf32> to vector<8x128xf32>
    %236 = vector.shape_cast %233 : vector<8x128xf32> to vector<1x1x8x128xf32>
    tpu.vector_store %arg5[%c0_67, %c4, %c0_68, %c0_69], %236 {strides = array<i32>} : memref<1x9x8x128xf32, #tpu.memory_space<vmem>>, vector<1x1x8x128xf32>,
    %237 = arith.fptosi %189 : vector<8x128xf32> to vector<8x128xi32>
    %238 = tpu.iota {dimensions = array<i32: 0>} : vector<4x8x128xi32>
    %239 = vector.shape_cast %237 : vector<8x128xi32> to vector<1x8x128xi32>
    %240 = vector.broadcast %239 : vector<1x8x128xi32> to vector<4x8x128xi32>
    %241 = arith.cmpi eq, %238, %240 : vector<4x8x128xi32>
    %242 = vector.shape_cast %198 : vector<8x128xi1> to vector<1x8x128xi1>
    %243 = vector.broadcast %242 : vector<1x8x128xi1> to vector<4x8x128xi1>
    %244 = arith.andi %241, %243 : vector<4x8x128xi1>
    %245 = arith.extui %244 : vector<4x8x128xi1> to vector<4x8x128xi32>
    %246 = arith.sitofp %245 : vector<4x8x128xi32> to vector<4x8x128xf32>
    %c0_70 = arith.constant 0 : index
    %c5 = arith.constant 5 : index
    %c0_71 = arith.constant 0 : index
    %c0_72 = arith.constant 0 : index
    %247 = vector.load %arg5[%c0_70, %c5, %c0_71, %c0_72] : memref<1x9x8x128xf32, #tpu.memory_space<vmem>>, vector<1x4x8x128xf32>
    %248 = vector.shape_cast %247 : vector<1x4x8x128xf32> to vector<4x8x128xf32>
    %249 = vector.shape_cast %246 : vector<4x8x128xf32> to vector<1x4x8x128xf32>
    tpu.vector_store %arg5[%c0_70, %c5, %c0_71, %c0_72], %249 {strides = array<i32>} : memref<1x9x8x128xf32, #tpu.memory_space<vmem>>, vector<1x4x8x128xf32>,
    %c0_73 = arith.constant 0 : index
    %c5_74 = arith.constant 5 : index
    %c0_75 = arith.constant 0 : index
    %c0_76 = arith.constant 0 : index
    %250 = vector.load %arg5[%c0_73, %c5_74, %c0_75, %c0_76] : memref<1x9x8x128xf32, #tpu.memory_space<vmem>>, vector<1x1x8x128xf32>
    %251 = vector.shape_cast %250 : vector<1x1x8x128xf32> to vector<8x128xf32>
    %252 = vector.shape_cast %196 : vector<8x128xf32> to vector<1x1x8x128xf32>
    tpu.vector_store %arg5[%c0_73, %c5_74, %c0_75, %c0_76], %252 {strides = array<i32>} : memref<1x9x8x128xf32, #tpu.memory_space<vmem>>, vector<1x1x8x128xf32>,
    return
  }
  func.func @transform_0(%arg0: i32, %arg1: i32) -> i32 {
    %c0_i32 = arith.constant 0 : i32
    %c0_i32_0 = arith.constant 0 : i32
    return %c0_i32 : i32
  }
  func.func @transform_1(%arg0: i32, %arg1: i32) -> i32 {
    %c0_i32 = arith.constant 0 : i32
    %c0_i32_0 = arith.constant 0 : i32
    return %c0_i32 : i32
  }
  func.func @transform_2(%arg0: i32, %arg1: i32) -> (i32, i32, i32) {
    %c0_i32 = arith.constant 0 : i32
    %c0_i32_0 = arith.constant 0 : i32
    %c0_i32_1 = arith.constant 0 : i32
    return %c0_i32, %arg1, %c0_i32_0 : i32, i32, i32
  }
  func.func @transform_3(%arg0: i32, %arg1: i32) -> (i32, i32, i32, i32) {
    %c0_i32 = arith.constant 0 : i32
    %c0_i32_0 = arith.constant 0 : i32
    %c0_i32_1 = arith.constant 0 : i32
    return %arg0, %c0_i32, %arg1, %c0_i32_0 : i32, i32, i32, i32
  }
}

</mosaic_0001>

<llo_original>
// kernel: tpu_custom_call.1
$region0: #{tpu_custom_call.1}
  #allocation0 [shape = 'u32[]', space=smem, size = 0x4, offset = 0x4, fixed_abs, tag = 'smem constant byte address 0x4 - core index']
  #allocation1 [shape = 'u32[144,128]{1,0:T(1,128)}', space=vmem, size = 0x12000, scoped, tag = 'internal scratch']
  %s0 = inlined_call_operand.hbm [shape: f32[24], index: 0, kind: input, shape index: {}]
  %s1 = inlined_call_operand.vmem [shape: s32[6], index: 1, kind: input, shape index: {}]
  %s2 = inlined_call_operand.hbm [shape: f32[4,8,128], index: 2, kind: input, shape index: {}]
  %s3 = inlined_call_operand.hbm [shape: f32[2,9,8,128], index: 3, kind: output, shape index: {}]
  %s4 = sld [smem:[#allocation0]]
  $region57: #{tpu_custom_call.1} parent=0
    _
  %s6 = ssub.s32 1, %s4
  %s7 = scalar_select 0, %s6, %s4
  $region1: #{tpu_custom_call.1} parent=0
    #allocation2 [shape = 'u8[512]{0}', space=smem, size = 0x200, scoped, tag = 'input window, operand 0, single buffered']
    #allocation3 [shape = 's32[2]{0}', space=sflag, size = 0x8, scoped, tag = 'scoped memory for tpu_custom_call.1']
    #allocation4 [shape = 's32[2]{0}', space=sflag, size = 0x8, scoped, tag = 'scoped memory for tpu_custom_call.1']
    #allocation5 [shape = 's32[2]{0}', space=sflag, size = 0x8, scoped, tag = 'scoped memory for tpu_custom_call.1']
    #allocation6 [shape = 's32[2]{0}', space=sflag, size = 0x8, scoped, tag = 'scoped memory for tpu_custom_call.1']
    #allocation7 [shape = 'u8[512]{0}', space=smem, size = 0x200, scoped, tag = 'input window, operand 1, single buffered']
    #allocation8 [shape = 'u8[16384]{0}', space=vmem, size = 0x4000, scoped, tag = 'input window, operand 2, single buffered']
    #allocation9 [shape = 'u8[73728]{0}', space=vmem, size = 0x12000, scoped, tag = 'output window, operand 0']
    %8 = vsyncpa [#allocation5], 0
    %9 = vsyncpa [#allocation6], 0
    %10 = vsyncpa [#allocation3], 0
    %11 = vsyncpa [#allocation4], 0
    %s12 = scalar_lea.sflag [#allocation4], 1
    %13 = vsyncpa %s12, 0
    loop: start=0, step=1, limit=4
    $region2: #{tpu_custom_call.1} parent=1 // loop_pre_header
      _
    $region3: #{tpu_custom_call.1} parent=1 // loop_header
      %s15 = sphi 0, %s19
      %p16 = scmp.ge.s32.totalorder %s15, 4
      %s22 = sphi 0, %s34
      %s23 = sphi 0, %s30
      %s24 = sphi 0, %s22
      %s25 = sphi 0, %s23
      %s26 = sphi 0, %s24
      %s27 = sphi 0, %s25
      %s35 = sphi 0, %s35
      %s37 = sphi 0, %s35
      %s38 = sphi 0, %s37
      %s52 = sphi 0, %s38
      %s56 = sphi 0, %s56
      %s58 = sphi 0, %s56
      %s59 = sphi 0, %s58
      %s73 = sphi 0, %s59
      %s79 = sphi 0, %s81
      %s82 = sphi 0, %s79
      %s83 = sphi 0, %s82
      %s99 = sphi 0, %s83
      %s107 = sphi 0, %s109
      %s110 = sphi 0, %s107
      %s111 = sphi 0, %s110
      %s127 = sphi 0, %s111
    $region4: #{tpu_custom_call.1} parent=1 // loop_header_branch
      %18 = sbr.rel (%p16) target = $region8
    $region5: #{tpu_custom_call.1} parent=1 // loop_body
      %s20 = ssub.s32 %s15, 1
      %s21 = ssub.s32 %s15, 2
      %s28 = sadd.s32 1, %s23
      %p29 = scmp.ge.s32.totalorder %s28, 1
      %s30 = scalar_select %p29, 0, %s28
      %s31 = sadd.s32 1, %s22
      %s32 = scalar_select %p29, %s31, %s22
      %p33 = scmp.ge.s32.totalorder %s32, 2
      %s34 = scalar_select %p33, 0, %s32
      %s36 = sadd.s32 %s35, 1
      %p39 = scmp.eq.s32.totalorder %s15, 1
      %p40 = scmp.ne.s32.totalorder %s35, %s37
      %p41 = scmp.eq.s32.totalorder %s15, 0
      %p42 = por %p40, %p41
      %p43 = scmp.ne.s32.totalorder %s35, %s37
      %p44 = scmp.eq.s32.totalorder %s20, 1
      %p45 = por %p43, %p44
      %p46 = scmp.ne.s32.totalorder %s37, %s38
      %p47 = scmp.eq.s32.totalorder %s20, 0
      %p48 = por %p46, %p47
      %p49 = scmp.ne.s32.totalorder %s37, %s38
      %p50 = scmp.eq.s32.totalorder %s21, 1
      %p51 = por %p49, %p50
      %p53 = scmp.ne.s32.totalorder %s38, %s52
      %p54 = scmp.eq.s32.totalorder %s21, 0
      %p55 = por %p53, %p54
      %s57 = sadd.s32 %s56, 1
      %p60 = scmp.eq.s32.totalorder %s15, 1
      %p61 = scmp.ne.s32.totalorder %s56, %s58
      %p62 = scmp.eq.s32.totalorder %s15, 0
      %p63 = por %p61, %p62
      %p64 = scmp.ne.s32.totalorder %s56, %s58
      %p65 = scmp.eq.s32.totalorder %s20, 1
      %p66 = por %p64, %p65
      %p67 = scmp.ne.s32.totalorder %s58, %s59
      %p68 = scmp.eq.s32.totalorder %s20, 0
      %p69 = por %p67, %p68
      %p70 = scmp.ne.s32.totalorder %s58, %s59
      %p71 = scmp.eq.s32.totalorder %s21, 1
      %p72 = por %p70, %p71
      %p74 = scmp.ne.s32.totalorder %s59, %s73
      %p75 = scmp.eq.s32.totalorder %s21, 0
      %p76 = por %p74, %p75
      %s77 = ssub.s32 %s23, %s30
      %p78 = scmp.eq.s32.totalorder %s77, 0
      %s80 = sadd.s32 %s79, 1
      %s81 = scalar_select %p78, %s79, %s80
      %p84 = pneg %p78
      %p85 = scmp.eq.s32.totalorder %s15, 1
      %p86 = por %p84, %p85
      %p87 = scmp.ne.s32.totalorder %s79, %s82
      %p88 = scmp.eq.s32.totalorder %s15, 0
      %p89 = por %p87, %p88
      %p90 = scmp.ne.s32.totalorder %s79, %s82
      %p91 = scmp.eq.s32.totalorder %s20, 1
      %p92 = por %p90, %p91
      %p93 = scmp.ne.s32.totalorder %s82, %s83
      %p94 = scmp.eq.s32.totalorder %s20, 0
      %p95 = por %p93, %p94
      %p96 = scmp.ne.s32.totalorder %s82, %s83
      %p97 = scmp.eq.s32.totalorder %s21, 1
      %p98 = por %p96, %p97
      %p100 = scmp.ne.s32.totalorder %s83, %s99
      %p101 = scmp.eq.s32.totalorder %s21, 0
      %p102 = por %p100, %p101
      %s103 = ssub.s32 %s22, %s34
      %s104 = ssub.s32 %s23, %s30
      %s105 = sor.u32 %s103, %s104
      %p106 = scmp.eq.s32.totalorder %s105, 0
      %s108 = sadd.s32 %s107, 1
      %s109 = scalar_select %p106, %s107, %s108
      %p112 = pneg %p106
      %p113 = scmp.eq.s32.totalorder %s15, 1
      %p114 = por %p112, %p113
      %p115 = scmp.ne.s32.totalorder %s107, %s110
      %p116 = scmp.eq.s32.totalorder %s15, 0
      %p117 = por %p115, %p116
      %p118 = scmp.ne.s32.totalorder %s107, %s110
      %p119 = scmp.eq.s32.totalorder %s20, 1
      %p120 = por %p118, %p119
      %p121 = scmp.ne.s32.totalorder %s110, %s111
      %p122 = scmp.eq.s32.totalorder %s20, 0
      %p123 = por %p121, %p122
      %p124 = scmp.ne.s32.totalorder %s110, %s111
      %p125 = scmp.eq.s32.totalorder %s21, 1
      %p126 = por %p124, %p125
      %p128 = scmp.ne.s32.totalorder %s111, %s127
      %p129 = scmp.eq.s32.totalorder %s21, 0
      %p130 = por %p128, %p129
      %p131 = scmp.le.s32.totalorder 1, %s15
      %p132 = scmp.lt.s32.totalorder %s15, 3
      %p133 = pnand %p131, %p132
      %p134 = pneg %p133
      // Predicated region
      $region9: #{tpu_custom_call.1} parent=5 // pred_check
        _
      $region10: #{tpu_custom_call.1} parent=5 // pred_check_branch
        %136 = sbr.rel (%p133) target = $region12
      $region11: #{tpu_custom_call.1} parent=5 // pred_region
        %s137 = ssub.s32 %s15, 1
        // Predicated region
        $region13: #{tpu_custom_call.1} parent=11 // pred_check
          %p138 = pneg %p48
        $region14: #{tpu_custom_call.1} parent=11 // pred_check_branch
          %140 = sbr.rel (%p138) target = $region16
        $region15: #{tpu_custom_call.1} parent=11 // pred_region
          %s142 = ssub.s32 16, 16
          %143 = vsyncadd [#allocation5], %s142
          %146 = dma.hbm_to_smem %s0, 16, [#allocation2], [#allocation5]
        $region16: #{tpu_custom_call.1} parent=11 // pred_fallthru
          _
        // Predicated region
        $region17: #{tpu_custom_call.1} parent=11 // pred_check
          %p147 = pneg %p69
        $region18: #{tpu_custom_call.1} parent=11 // pred_check_branch
          %149 = sbr.rel (%p147) target = $region20
        $region19: #{tpu_custom_call.1} parent=11 // pred_region
          %s151 = ssub.s32 16, 16
          %152 = vsyncadd [#allocation6], %s151
          %s154 = sshll.u32 %s1, 4
          %s155 = int_to_ptr.vmem [resolvable:$true] %s154
          %157 = dma.vmem_to_smem %s155, 16, [#allocation7], [#allocation6]
        $region20: #{tpu_custom_call.1} parent=11 // pred_fallthru
          _
        // Predicated region
        $region21: #{tpu_custom_call.1} parent=11 // pred_check
          %p158 = pneg %p95
        $region22: #{tpu_custom_call.1} parent=11 // pred_check_branch
          %160 = sbr.rel (%p158) target = $region24
        $region23: #{tpu_custom_call.1} parent=11 // pred_region
          %s162 = ssub.s32 512, 512
          %163 = vsyncadd [#allocation3], %s162
          %s164 = smul.addr %s25, 128
          %s165 = scalar_lea.hbm %s2, %s164
          %s166 = sshll.u32 [#allocation8], 4
          %s167 = int_to_ptr.vmem [resolvable:$true] %s166
          %172 = dma.hbm_to_vmem [thread:$0]  %s165, 512, %s167, [#allocation3], 128, 128, 8
        $region24: #{tpu_custom_call.1} parent=11 // pred_fallthru
          _
      $region12: #{tpu_custom_call.1} parent=5 // pred_fallthru
        _
      %p173 = scmp.lt.s32.totalorder %s15, 2
      // Predicated region
      $region25: #{tpu_custom_call.1} parent=5 // pred_check
        %p174 = pneg %p173
      $region26: #{tpu_custom_call.1} parent=5 // pred_check_branch
        %176 = sbr.rel (%p174) target = $region28
      $region27: #{tpu_custom_call.1} parent=5 // pred_region
        _
      $region28: #{tpu_custom_call.1} parent=5 // pred_fallthru
        _
      %p177 = scmp.le.s32.totalorder 1, %s15
      %p178 = scmp.lt.s32.totalorder %s15, 3
      %p179 = pnand %p177, %p178
      %p180 = pneg %p179
      // Predicated region
      $region29: #{tpu_custom_call.1} parent=5 // pred_check
        _
      $region30: #{tpu_custom_call.1} parent=5 // pred_check_branch
        %182 = sbr.rel (%p179) target = $region32
      $region31: #{tpu_custom_call.1} parent=5 // pred_region
        %s183 = ssub.s32 %s15, 1
        // Predicated region
        $region33: #{tpu_custom_call.1} parent=31 // pred_check
          %p184 = pneg %p48
        $region34: #{tpu_custom_call.1} parent=31 // pred_check_branch
          %186 = sbr.rel (%p184) target = $region36
        $region35: #{tpu_custom_call.1} parent=31 // pred_region
          %187 = dma.done [#allocation5], 16
        $region36: #{tpu_custom_call.1} parent=31 // pred_fallthru
          _
        // Predicated region
        $region37: #{tpu_custom_call.1} parent=31 // pred_check
          %p188 = pneg %p69
        $region38: #{tpu_custom_call.1} parent=31 // pred_check_branch
          %190 = sbr.rel (%p188) target = $region40
        $region39: #{tpu_custom_call.1} parent=31 // pred_region
          %191 = dma.done [#allocation6], 16
        $region40: #{tpu_custom_call.1} parent=31 // pred_fallthru
          _
        // Predicated region
        $region41: #{tpu_custom_call.1} parent=31 // pred_check
          %p192 = pneg %p95
        $region42: #{tpu_custom_call.1} parent=31 // pred_check_branch
          %194 = sbr.rel (%p192) target = $region44
        $region43: #{tpu_custom_call.1} parent=31 // pred_region
          %195 = dma.done [#allocation3], 512
        $region44: #{tpu_custom_call.1} parent=31 // pred_fallthru
          _
        %196 = sfence
        %p197 = pneg %p48
        %p198 = pneg %p45
        %p199 = pneg %p69
        %p200 = pneg %p66
        %p201 = pneg %p95
        %p202 = pneg %p92
        %p203 = pneg %p123
        %p204 = pneg %p120
        %s205 = sand.u32 %s110, 1
        %s206 = scalar_lea.sflag [#allocation4], %s205
        %s207 = sand.u32 %s110, 1
        %s208 = smul.addr %s207, 72
        %s209 = scalar_lea.vmem [#allocation9], %s208
        %s210 = smul.u32 %s24, 12
        %s211 = smul.u32 %s24, 3
        %v212 = vld [vmem:[#allocation8] sm:$0xff]
        %s213 = scalar_lea.vmem [#allocation8], 8
        %v214 = vld [vmem:[%s213] sm:$0xff]
        %s215 = scalar_lea.vmem [#allocation8], 16
        %v216 = vld [vmem:[%s215] sm:$0xff]
        %s217 = scalar_lea.vmem [#allocation8], 24
        %v218 = vld [vmem:[%s217] sm:$0xff]
        %s219 = sld [smem:[#allocation2 + %s210]]
        %s220 = sadd.s32 %s210, 1
        %s221 = sld [smem:[#allocation2 + %s220]]
        %s222 = sadd.s32 %s210, 2
        %s223 = sld [smem:[#allocation2 + %s222]]
        %s224 = sadd.s32 %s210, 3
        %s225 = sld [smem:[#allocation2 + %s224]]
        %s226 = sld [smem:[#allocation7 + %s211]]
        %v227 = vstv %s219
        %v228 = vsub.f32 %v212, %v227
        %v229 = vstv %s221
        %v230 = vsub.f32 %v214, %v229
        %v231 = vstv %s223
        %v232 = vsub.f32 %v231, %v212
        %v233 = vstv %s225
        %v234 = vsub.f32 %v233, %v214
        %v235 = vmin.f32 %v228, %v230
        %v236 = vmin.f32 %v232, %v234
        %v237 = vmin.f32 %v235, %v236
        %v238 = vmax.f32 %v228, %v230
        %v239 = vmax.f32 %v232, %v234
        %v240 = vmax.f32 %v238, %v239
        %vm241 = vcmp.ge.f32.partialorder %v237, 0.0
        %vm242 = vcmp.gt.f32.partialorder %v240, %v216
        %vm243 = vmand %vm241, %vm242
        %vm244 = vcmp.le.f32.partialorder %v240, %v218
        %vm245 = vmand %vm243, %vm244
        %v246 = vsel %vm245, %v227, 0.0
        %v247 = vsel %vm245, %v229, 0.0
        %v248 = vsel %vm245, %v231, 0.0
        %v249 = vsel %vm245, %v233, 0.0
        %s250 = scvt.s32.f32 %s226
        %v251 = vstv %s250
        %v252 = vsel %vm245, %v251, -1.0
        %p253 = scmp.eq.s32.totalorder %s226, 0
        %s254 = scalar_select %p253, 1, 0
        %s255 = scvt.s32.f32 %s254
        %v256 = vsel %vm241, 0.0, 1.0
        %v257 = vstv %s255
        %v258 = vsel %vm245, %v257, %v256
        %s259 = sadd.s32 %s210, 4
        %s260 = sld [smem:[#allocation2 + %s259]]
        %s261 = sadd.s32 %s210, 5
        %s262 = sld [smem:[#allocation2 + %s261]]
        %s263 = sadd.s32 %s210, 6
        %s264 = sld [smem:[#allocation2 + %s263]]
        %s265 = sadd.s32 %s210, 7
        %s266 = sld [smem:[#allocation2 + %s265]]
        %s267 = sadd.s32 %s211, 1
        %s268 = sld [smem:[#allocation7 + %s267]]
        %v269 = vstv %s260
        %v270 = vsub.f32 %v212, %v269
        %v271 = vstv %s262
        %v272 = vsub.f32 %v214, %v271
        %v273 = vstv %s264
        %v274 = vsub.f32 %v273, %v212
        %v275 = vstv %s266
        %v276 = vsub.f32 %v275, %v214
        %v277 = vmin.f32 %v270, %v272
        %v278 = vmin.f32 %v274, %v276
        %v279 = vmin.f32 %v277, %v278
        %v280 = vmax.f32 %v270, %v272
        %v281 = vmax.f32 %v274, %v276
        %v282 = vmax.f32 %v280, %v281
        %vm283 = vcmp.ge.f32.partialorder %v279, 0.0
        %vm284 = vcmp.gt.f32.partialorder %v282, %v216
        %vm285 = vmand %vm283, %vm284
        %vm286 = vcmp.le.f32.partialorder %v282, %v218
        %vm287 = vmand %vm285, %vm286
        %v288 = vsel %vm287, %v269, %v246
        %v289 = vsel %vm287, %v271, %v247
        %v290 = vsel %vm287, %v273, %v248
        %v291 = vsel %vm287, %v275, %v249
        %s292 = scvt.s32.f32 %s268
        %v293 = vstv %s292
        %v294 = vsel %vm287, %v293, %v252
        %p295 = scmp.eq.s32.totalorder %s268, 0
        %s296 = scalar_select %p295, 1, 0
        %s297 = scvt.s32.f32 %s296
        %v298 = vsel %vm283, 0.0, %v258
        %v299 = vstv %s297
        %v300 = vsel %vm287, %v299, %v298
        %s301 = sadd.s32 %s210, 8
        %s302 = sld [smem:[#allocation2 + %s301]]
        %s303 = sadd.s32 %s210, 9
        %s304 = sld [smem:[#allocation2 + %s303]]
        %s305 = sadd.s32 %s210, 10
        %s306 = sld [smem:[#allocation2 + %s305]]
        %s307 = sadd.s32 %s210, 11
        %s308 = sld [smem:[#allocation2 + %s307]]
        %s309 = sadd.s32 %s211, 2
        %s310 = sld [smem:[#allocation7 + %s309]]
        %v311 = vstv %s302
        %v312 = vsub.f32 %v212, %v311
        %v313 = vstv %s304
        %v314 = vsub.f32 %v214, %v313
        %v315 = vstv %s306
        %v316 = vsub.f32 %v315, %v212
        %v317 = vstv %s308
        %v318 = vsub.f32 %v317, %v214
        %v319 = vmin.f32 %v312, %v314
        %v320 = vmin.f32 %v316, %v318
        %v321 = vmin.f32 %v319, %v320
        %v322 = vmax.f32 %v312, %v314
        %v323 = vmax.f32 %v316, %v318
        %v324 = vmax.f32 %v322, %v323
        %vm325 = vcmp.ge.f32.partialorder %v321, 0.0
        %vm326 = vcmp.gt.f32.partialorder %v324, %v216
        %vm327 = vmand %vm325, %vm326
        %vm328 = vcmp.le.f32.partialorder %v324, %v218
        %vm329 = vmand %vm327, %vm328
        %v330 = vsel %vm329, %v311, %v288
        %v331 = vsel %vm329, %v313, %v289
        %v332 = vsel %vm329, %v315, %v290
        %v333 = vsel %vm329, %v317, %v291
        %s334 = scvt.s32.f32 %s310
        %v335 = vstv %s334
        %v336 = vsel %vm329, %v335, %v294
        %p337 = scmp.eq.s32.totalorder %s310, 0
        %s338 = scalar_select %p337, 1, 0
        %s339 = scvt.s32.f32 %s338
        %v340 = vsel %vm325, 0.0, %v300
        %v341 = vstv %s339
        %v342 = vsel %vm329, %v341, %v340
        %vm343 = vcmp.ge.f32.partialorder %v336, 0.0
        %v344 = vsub.f32 %v212, %v330
        %v345 = vsub.f32 %v214, %v331
        %v346 = vsub.f32 %v332, %v212
        %v347 = vsub.f32 %v333, %v214
        %v348 = vsel %vm343, %v344, 0.0
        %349 = vst [vmem:[%s209] sm:$0xff] %v348
        %v350 = vsel %vm343, %v345, 0.0
        %s351 = scalar_lea.vmem %s209, 8 [#allocation9]
        %352 = vst [vmem:[%s351] sm:$0xff] %v350
        %v353 = vsel %vm343, %v346, 0.0
        %s354 = scalar_lea.vmem %s209, 16 [#allocation9]
        %355 = vst [vmem:[%s354] sm:$0xff] %v353
        %v356 = vsel %vm343, %v347, 0.0
        %s357 = scalar_lea.vmem %s209, 24 [#allocation9]
        %358 = vst [vmem:[%s357] sm:$0xff] %v356
        %v359 = vmin.f32 %v344, %v346
        %v360 = vmin.f32 %v345, %v347
        %v361 = vmul.f32 %v359, %v360
        %v362 = vmax.f32 %v344, %v346
        %v363 = vmax.f32 %v345, %v347
        %v364 = vmul.f32 %v362, %v363
        %v365 = vrsqrt.pop %v361
        %v366 = vmul.f32 %v361, %v365
        %vm367 = vcmp.eq.f32.partialorder %v361, inf
        %v368 = vsel %vm367, %v361, %v366
        %vm369 = vcmp.eq.f32.partialorder %v361, 0.0
        %v370 = vand.u32 %v361, 2147483648
        %v371 = vsel %vm369, %v370, %v368
        %v372 = vrsqrt.pop %v364
        %v373 = vmul.f32 %v371, %v372
        %v374 = vsel %vm343, %v373, 0.0
        %s375 = scalar_lea.vmem %s209, 32 [#allocation9]
        %376 = vst [vmem:[%s375] sm:$0xff] %v374
        %v377 = vcvt.f32.s32.to.zero.pseudo %v336
        %vm378 = vcmp.eq.s32.totalorder %v377, 0
        %vm379 = vcmp.eq.s32.totalorder %v377, 1
        %vm380 = vcmp.eq.s32.totalorder %v377, 2
        %vm381 = vcmp.eq.s32.totalorder %v377, 3
        %v382 = vsel %vm343, 1, 0
        %vm383 = vcmp.eq.s32.totalorder %v382, 1
        %vm384 = vmand %vm378, %vm383
        %vm385 = vmand %vm379, %vm383
        %vm386 = vmand %vm380, %vm383
        %vm387 = vmand %vm381, %vm383
        %v388 = vsel %vm384, 1, 0
        %v389 = vsel %vm385, 1, 0
        %v390 = vsel %vm386, 1, 0
        %v391 = vsel %vm387, 1, 0
        %v392 = vcvt.s32.f32 %v388
        %v393 = vcvt.s32.f32 %v389
        %v394 = vcvt.s32.f32 %v390
        %v395 = vcvt.s32.f32 %v391
        %s396 = scalar_lea.vmem %s209, 40 [#allocation9]
        %397 = vst [vmem:[%s396] sm:$0xff] %v392
        %398 = vst [vmem:[%s396 + $0x8] sm:$0xff] %v393
        %399 = vst [vmem:[%s396 + $0x10] sm:$0xff] %v394
        %400 = vst [vmem:[%s396 + $0x18] sm:$0xff] %v395
        %401 = vst [vmem:[%s396] sm:$0xff] %v342
        %s402 = sand.u32 %s110, 1
        %s403 = scalar_lea.sflag [#allocation4], %s402
        %s404 = sand.u32 %s110, 1
        %s405 = smul.addr %s404, 72
        %s406 = scalar_lea.vmem [#allocation9], %s405
        // Predicated region
        $region45: #{tpu_custom_call.1} parent=31 // pred_check
          %p407 = pneg %p120
        $region46: #{tpu_custom_call.1} parent=31 // pred_check_branch
          %409 = sbr.rel (%p407) target = $region48
        $region47: #{tpu_custom_call.1} parent=31 // pred_region
          %s411 = ssub.s32 1152, 1152
          %412 = vsyncadd %s403, %s411
          %s413 = smul.addr %s24, 9
          %s414 = sadd.s32 %s25, %s413
          %s415 = smul.addr %s414, 128
          %s416 = scalar_lea.hbm %s3, %s415
          %s417 = sshll.u32 %s406, 4
          %s418 = int_to_ptr.vmem [resolvable:$true] %s417
          %423 = dma.vmem_to_hbm [thread:$0]  %s418, 1152, %s416, %s403, 128, 128, 8
        $region48: #{tpu_custom_call.1} parent=31 // pred_fallthru
          _
      $region32: #{tpu_custom_call.1} parent=5 // pred_fallthru
        _
      %p424 = scmp.le.s32.totalorder 2, %s15
      // Predicated region
      $region49: #{tpu_custom_call.1} parent=5 // pred_check
        %p425 = pneg %p424
      $region50: #{tpu_custom_call.1} parent=5 // pred_check_branch
        %427 = sbr.rel (%p425) target = $region52
      $region51: #{tpu_custom_call.1} parent=5 // pred_region
        %s428 = ssub.s32 %s15, 2
        // Predicated region
        $region53: #{tpu_custom_call.1} parent=51 // pred_check
          %p429 = pneg %p126
        $region54: #{tpu_custom_call.1} parent=51 // pred_check_branch
          %431 = sbr.rel (%p429) target = $region56
        $region55: #{tpu_custom_call.1} parent=51 // pred_region
          %s432 = sand.u32 %s111, 1
          %s433 = scalar_lea.sflag [#allocation4], %s432
          %s434 = sand.u32 %s111, 1
          %s435 = smul.addr %s434, 72
          %s436 = scalar_lea.vmem [#allocation9], %s435
          %437 = dma.done %s433, 1152
        $region56: #{tpu_custom_call.1} parent=51 // pred_fallthru
          _
      $region52: #{tpu_custom_call.1} parent=5 // pred_fallthru
        _
    $region6: #{tpu_custom_call.1} parent=1 // loop_footer
      %s19 = sadd.s32 1, %s15
    $region7: #{tpu_custom_call.1} parent=1 // loop_footer_branch
      %14 = sbr.rel target = $region3
    $region8: #{tpu_custom_call.1} parent=1 // loop_exit
      _
    %438 = vsyncpa [#allocation3], 1
    %s439 = scalar_lea.sflag [#allocation3], 1
    %440 = vsyncpa %s439, 1
    %441 = vsyncpa [#allocation4], 1
    %s442 = scalar_lea.sflag [#allocation4], 1
    %443 = vsyncpa %s442, 1
    %444 = vsyncpa [#allocation5], 1
    %s445 = scalar_lea.sflag [#allocation5], 1
    %446 = vsyncpa %s445, 1
    %447 = vsyncpa [#allocation6], 1
    %s448 = scalar_lea.sflag [#allocation6], 1
    %449 = vsyncpa %s448, 1

</llo_original>
